<compile_context>
chip_gen: v5e
topology: v5e:2x2
jax: 0.10.0
libtpu: 0.0.40
codegen_flags: <defaults>
</compile_context>

<pallas_src>
import functools

import jax
import jax.numpy as jnp
from jax.experimental import pallas as pl
from jax.experimental.pallas import tpu as pltpu


def _round_up(x, m):
    return ((x + m - 1) // m) * m


def _log_softmax_terms(logits):
    """Returns (log_p, log_1mp) with nn.BCELoss's -100 log clamps, all f32."""
    m = jnp.max(logits, axis=1, keepdims=True)
    z = logits - m                                 # z <= 0
    e = jnp.exp(z)
    s = jnp.sum(e, axis=1, keepdims=True)          # s >= 1
    log_s = jnp.log(s)
    log_p = jnp.maximum(z - log_s, -100.0)
    # 1 - p_j = (s - e_j) / s ; guard against exact-zero before the log.
    log_1mp = jnp.maximum(jnp.log(jnp.maximum(s - e, 0.0)) - log_s, -100.0)
    return log_p, log_1mp


def _row_mask(tile_n, n_rows):
    row_ids = (pl.program_id(0) * tile_n
               + jax.lax.broadcasted_iota(jnp.int32, (tile_n, 1), 0))
    return row_ids < n_rows


def _cbce_index_kernel(pred_ref, tgt_ref, out_ref, *, n_rows):
    # pred_ref: (tile_n, C) float; tgt_ref: (tile_n, 1) int32 class indices;
    # out_ref : (tile_n, 1) f32 per-row loss sums (rows past n_rows write 0).
    logits = pred_ref[...].astype(jnp.float32)     # keep wire dtype on HBM, f32 math
    tile_n, c = logits.shape

    log_p, log_1mp = _log_softmax_terms(logits)

    # One-hot structure without materializing y:
    #   row_loss = -sum_j log(1-p_j) + (log(1-p_t) - log(p_t))   for t = target
    classes = jax.lax.broadcasted_iota(jnp.int32, (tile_n, c), 1)
    is_tgt = classes == tgt_ref[...]
    corr = jnp.where(is_tgt, log_1mp - log_p, 0.0)
    row_loss = (jnp.sum(corr, axis=1, keepdims=True)
                - jnp.sum(log_1mp, axis=1, keepdims=True))

    out_ref[...] = jnp.where(_row_mask(tile_n, n_rows), row_loss, 0.0)


def _cbce_dense_kernel(pred_ref, tgt_ref, out_ref, *, n_rows):
    # Dense / soft-label path: tgt_ref is (tile_n, C) float probabilities.
    logits = pred_ref[...].astype(jnp.float32)
    y = tgt_ref[...].astype(jnp.float32)
    tile_n, c = logits.shape

    log_p, log_1mp = _log_softmax_terms(logits)
    elem = y * log_p + (1.0 - y) * log_1mp
    row_loss = -jnp.sum(elem, axis=1, keepdims=True)

    out_ref[...] = jnp.where(_row_mask(tile_n, n_rows), row_loss, 0.0)


def categorical_bce(prediction, target, *, reduction="mean", tile_n=None):
    """prediction: (N, C) float logits.
    target: (N,) int class indices OR (N, C) float probabilities (soft labels).
    reduction: 'mean' (default, over all N*C elements), 'sum', or 'none'
               ('none' matches the module: per-row mean over classes, shape (N,))."""
    n, c = prediction.shape
    dense = target.shape == prediction.shape

    if tile_n is None:
        # Keep each live f32 (tile_n, C) intermediate <= ~2 MiB so double-buffered
        # inputs plus a handful of temporaries stay well under 32 MiB scoped VMEM.
        budget = 2 * 1024 * 1024
        tile_n = min(1024, max(8, budget // max(1, c * 4)), _round_up(n, 8))
    tile_n = max(8, (int(tile_n) // 8) * 8)        # sublane-aligned row tile
    num_tiles = pl.cdiv(n, tile_n)                 # ragged last tile handled in-kernel

    if dense:
        kernel = functools.partial(_cbce_dense_kernel, n_rows=n)
        tgt = target
        tgt_spec = pl.BlockSpec((tile_n, c), lambda i: (i, 0))
    else:
        kernel = functools.partial(_cbce_index_kernel, n_rows=n)
        tgt = target.astype(jnp.int32).reshape(n, 1)
        tgt_spec = pl.BlockSpec((tile_n, 1), lambda i: (i, 0))

    per_row = pl.pallas_call(
        kernel,
        out_shape=jax.ShapeDtypeStruct((n, 1), jnp.float32),
        grid_spec=pltpu.PrefetchScalarGridSpec(
            num_scalar_prefetch=0,
            grid=(num_tiles,),
            in_specs=[
                pl.BlockSpec((tile_n, c), lambda i: (i, 0)),
                tgt_spec,
            ],
            out_specs=pl.BlockSpec((tile_n, 1), lambda i: (i, 0)),
        ),
        compiler_params=pltpu.CompilerParams(
            dimension_semantics=("parallel",),     # independent tiles -> both TCs
            vmem_limit_bytes=32 * 1024 * 1024,
        ),
    )(prediction, tgt)

    if reduction == "mean":
        # mean over ALL N*C elements (global denominator, not per-block).
        return jnp.sum(per_row) * jnp.float32(1.0 / (n * c))
    if reduction == "sum":
        return jnp.sum(per_row)
    if reduction == "none":
        # module: BCELoss(reduction='none')(...).mean(dim=1)  -> (N,)
        return per_row[:, 0] * jnp.float32(1.0 / c)
    raise ValueError(f"unsupported reduction: {reduction}")


def _reference(prediction, target, reduction="mean"):
    # pure-JAX reference for sanity checking (mirrors the PyTorch module)
    p = jax.nn.softmax(prediction.astype(jnp.float32), axis=1)
    if target.shape == prediction.shape:
        y = target.astype(jnp.float32)
    else:
        y = jax.nn.one_hot(target, prediction.shape[1], dtype=jnp.float32)
    log_p = jnp.maximum(jnp.log(p), -100.0)
    log_1mp = jnp.maximum(jnp.log(1.0 - p), -100.0)
    elem = -(y * log_p + (1.0 - y) * log_1mp)
    if reduction == "mean":
        return jnp.mean(elem)
    if reduction == "none":
        return jnp.mean(elem, axis=1)
    return jnp.sum(elem)


if __name__ == "__main__":
    key = jax.random.PRNGKey(0)
    k1, k2, k3, k4 = jax.random.split(key, 4)

    # Case 1: single tile (block == full array), integer targets, mean reduction.
    N, C = 16, 32
    pred = jax.random.normal(k1, (N, C), dtype=jnp.float32)
    tgt = jax.random.randint(k2, (N,), 0, C, dtype=jnp.int32)
    out = categorical_bce(pred, tgt)
    jax.block_until_ready(out)
    ref = _reference(pred, tgt)
    assert jnp.allclose(out, ref, rtol=2e-3, atol=2e-3), (out, ref)

    # Case 2: multi-tile grid with a ragged last tile (no wrapper padding).
    N2, C2 = 20, 32
    pred2 = jax.random.normal(k3, (N2, C2), dtype=jnp.float32)
    tgt2 = jax.random.randint(k4, (N2,), 0, C2, dtype=jnp.int32)
    out2 = categorical_bce(pred2, tgt2, tile_n=8)
    jax.block_until_ready(out2)
    ref2 = _reference(pred2, tgt2)
    assert jnp.allclose(out2, ref2, rtol=2e-3, atol=2e-3), (out2, ref2)

    # Case 3: target already one-hot / soft labels (target.shape == prediction.shape).
    soft = jax.nn.one_hot(tgt2, C2, dtype=jnp.float32)
    out3 = categorical_bce(pred2, soft, tile_n=8)
    jax.block_until_ready(out3)
    ref3 = _reference(pred2, soft)
    assert jnp.allclose(out3, ref3, rtol=2e-3, atol=2e-3), (out3, ref3)

    # Case 4: reduction='none' (BCE 'none' followed by mean over classes).
    out4 = categorical_bce(pred2, tgt2, reduction="none", tile_n=8)
    jax.block_until_ready(out4)
    ref4 = _reference(pred2, tgt2, reduction="none")
    assert jnp.allclose(out4, ref4, rtol=2e-3, atol=2e-3), (out4, ref4)

    print("KERNEL_OK")
</pallas_src>

<mosaic_0001>
module attributes {stable_mosaic.version = 11 : i64} {
  func.func @_cbce_index_kernel(%arg0: i32, %arg1: memref<16x32xf32, #tpu.memory_space<vmem>>, %arg2: memref<16x1xi32, #tpu.memory_space<vmem>>, %arg3: memref<16x1xf32, #tpu.memory_space<vmem>>) attributes {dimension_semantics = [#tpu.dimension_semantics<parallel>], iteration_bounds = array<i64: 1>, scalar_prefetch = 0 : i64, scratch_operands = 0 : i64, tpu.core_type = #tpu.core_type<tc>, window_params = [{transform_indices = @transform_0, window_bounds = array<i64: 16, 32>}, {transform_indices = @transform_1, window_bounds = array<i64: 16, 1>}, {transform_indices = @transform_2, window_bounds = array<i64: 16, 1>}]} {
    %c0 = arith.constant 0 : index
    %c0_0 = arith.constant 0 : index
    %0 = vector.load %arg1[%c0, %c0_0] : memref<16x32xf32, #tpu.memory_space<vmem>>, vector<16x32xf32>
    %cst = arith.constant dense<0xFF800000> : vector<16xf32>
    %1 = vector.multi_reduction <maximumf>, %0, %cst [1] : vector<16x32xf32> to vector<16xf32>
    %2 = vector.shape_cast %1 : vector<16xf32> to vector<16x1xf32>
    %3 = vector.broadcast %2 : vector<16x1xf32> to vector<16x32xf32>
    %4 = arith.subf %0, %3 : vector<16x32xf32>
    %5 = math.exp %4 : vector<16x32xf32>
    %cst_1 = arith.constant dense<0.000000e+00> : vector<16xf32>
    %6 = vector.multi_reduction <add>, %5, %cst_1 [1] : vector<16x32xf32> to vector<16xf32>
    %7 = vector.shape_cast %6 : vector<16xf32> to vector<16x1xf32>
    %8 = math.log %7 : vector<16x1xf32>
    %9 = vector.broadcast %8 : vector<16x1xf32> to vector<16x32xf32>
    %10 = arith.subf %4, %9 : vector<16x32xf32>
    %cst_2 = arith.constant -1.000000e+02 : f32
    %11 = vector.broadcast %cst_2 : f32 to vector<16x32xf32>
    %12 = arith.maximumf %10, %11 : vector<16x32xf32>
    %13 = vector.broadcast %7 : vector<16x1xf32> to vector<16x32xf32>
    %14 = arith.subf %13, %5 : vector<16x32xf32>
    %cst_3 = arith.constant 0.000000e+00 : f32
    %15 = vector.broadcast %cst_3 : f32 to vector<16x32xf32>
    %16 = arith.maximumf %14, %15 : vector<16x32xf32>
    %17 = math.log %16 : vector<16x32xf32>
    %18 = vector.broadcast %8 : vector<16x1xf32> to vector<16x32xf32>
    %19 = arith.subf %17, %18 : vector<16x32xf32>
    %cst_4 = arith.constant -1.000000e+02 : f32
    %20 = vector.broadcast %cst_4 : f32 to vector<16x32xf32>
    %21 = arith.maximumf %19, %20 : vector<16x32xf32>
    %22 = tpu.iota {dimensions = array<i32: 1>} : vector<16x32xi32>
    %c0_5 = arith.constant 0 : index
    %c0_6 = arith.constant 0 : index
    %23 = vector.load %arg2[%c0_5, %c0_6] : memref<16x1xi32, #tpu.memory_space<vmem>>, vector<16x1xi32>
    %24 = vector.broadcast %23 : vector<16x1xi32> to vector<16x32xi32>
    %25 = arith.cmpi eq, %22, %24 : vector<16x32xi32>
    %26 = arith.subf %21, %12 : vector<16x32xf32>
    %cst_7 = arith.constant 0.000000e+00 : f32
    %27 = vector.broadcast %cst_7 : f32 to vector<16x32xf32>
    %28 = arith.select %25, %26, %27 : vector<16x32xi1>, vector<16x32xf32>
    %cst_8 = arith.constant dense<0.000000e+00> : vector<16xf32>
    %29 = vector.multi_reduction <add>, %28, %cst_8 [1] : vector<16x32xf32> to vector<16xf32>
    %30 = vector.shape_cast %29 : vector<16xf32> to vector<16x1xf32>
    %cst_9 = arith.constant dense<0.000000e+00> : vector<16xf32>
    %31 = vector.multi_reduction <add>, %21, %cst_9 [1] : vector<16x32xf32> to vector<16xf32>
    %32 = vector.shape_cast %31 : vector<16xf32> to vector<16x1xf32>
    %33 = arith.subf %30, %32 : vector<16x1xf32>
    %c16_i32 = arith.constant 16 : i32
    %34 = arith.muli %arg0, %c16_i32 : i32
    %35 = tpu.iota {dimensions = array<i32: 0>} : vector<16x1xi32>
    %36 = vector.broadcast %34 : i32 to vector<16x1xi32>
    %37 = arith.addi %36, %35 : vector<16x1xi32>
    %c16_i32_10 = arith.constant 16 : i32
    %38 = vector.broadcast %c16_i32_10 : i32 to vector<16x1xi32>
    %39 = arith.cmpi slt, %37, %38 : vector<16x1xi32>
    %cst_11 = arith.constant 0.000000e+00 : f32
    %40 = vector.broadcast %cst_11 : f32 to vector<16x1xf32>
    %41 = arith.select %39, %33, %40 : vector<16x1xi1>, vector<16x1xf32>
    %c0_12 = arith.constant 0 : index
    %c0_13 = arith.constant 0 : index
    %42 = vector.load %arg3[%c0_12, %c0_13] : memref<16x1xf32, #tpu.memory_space<vmem>>, vector<16x1xf32>
    tpu.vector_store %arg3[%c0_12, %c0_13], %41 {strides = array<i32>} : memref<16x1xf32, #tpu.memory_space<vmem>>, vector<16x1xf32>,
    return
  }
  func.func @transform_0(%arg0: i32) -> (i32, i32) {
    %c0_i32 = arith.constant 0 : i32
    %c0_i32_0 = arith.constant 0 : i32
    return %arg0, %c0_i32 : i32, i32
  }
  func.func @transform_1(%arg0: i32) -> (i32, i32) {
    %c0_i32 = arith.constant 0 : i32
    %c0_i32_0 = arith.constant 0 : i32
    return %arg0, %c0_i32 : i32, i32
  }
  func.func @transform_2(%arg0: i32) -> (i32, i32) {
    %c0_i32 = arith.constant 0 : i32
    %c0_i32_0 = arith.constant 0 : i32
    return %arg0, %c0_i32 : i32, i32
  }
}

</mosaic_0001>

<llo_original>
// kernel: tpu_custom_call.1
$region0: #{tpu_custom_call.1}
  #allocation0 [shape = 'u32[]', space=smem, size = 0x4, offset = 0x4, fixed_abs, tag = 'smem constant byte address 0x4 - core index']
  #allocation1 [shape = 'u32[72,128]{1,0:T(1,128)}', space=vmem, size = 0x9000, scoped, tag = 'internal scratch']
  %s0 = inlined_call_operand.vmem [shape: f32[16,32], index: 0, kind: input, shape index: {}]
  %s1 = inlined_call_operand.vmem [shape: s32[16,1], index: 1, kind: input, shape index: {}]
  %s2 = inlined_call_operand.vmem [shape: f32[16,1], index: 2, kind: output, shape index: {}]
  %s3 = sld [smem:[#allocation0]]
  $region18: #{tpu_custom_call.1} parent=0
    _
  %s5 = ssub.s32 1, %s3
  %s6 = scalar_select 0, %s5, %s3
  // Predicated region
  $region2: #{tpu_custom_call.1} parent=0 // pred_check
    _
  $region3: #{tpu_custom_call.1} parent=0 // pred_check_branch
    %8 = sbr.rel (0) target = $region5
  $region4: #{tpu_custom_call.1} parent=0 // pred_region
    _
  $region5: #{tpu_custom_call.1} parent=0 // pred_fallthru
    _
  // Predicated region
  $region6: #{tpu_custom_call.1} parent=0 // pred_check
    _
  $region7: #{tpu_custom_call.1} parent=0 // pred_check_branch
    %10 = sbr.rel (0) target = $region9
  $region8: #{tpu_custom_call.1} parent=0 // pred_region
    _
  $region9: #{tpu_custom_call.1} parent=0 // pred_fallthru
    _
  %v11 = vld [vmem:[%s0] sm:$0xff]
  %v12 = vld [vmem:[%s0 + $0x8] sm:$0xff]
  %vm13 = vcmask 261120
  %v14 = vsel %vm13, %v11, -inf
  %15 = vmax.xlane.f32.xlu0 %v14
  %v16 = vpop.xlane.xlu0 %15
  %v17 = vsel %vm13, %v12, -inf
  %18 = vmax.xlane.f32.xlu0 %v17
  %v19 = vpop.xlane.xlu0 %18
  %v20 = vsub.f32 %v11, %v16
  %v21 = vsub.f32 %v12, %v19
  %v22 = vmul.f32 %v20, 1.442695
  %v23 = vpow.pop %v22
  %v24 = vmul.f32 %v21, 1.442695
  %v25 = vpow.pop %v24
  %v26 = vsel %vm13, %v23, 0.0
  %27 = vadd.xlane.f32.xlu0 %v26
  %v28 = vpop.xlane.xlu0 %27
  %v29 = vsel %vm13, %v25, 0.0
  %30 = vadd.xlane.f32.xlu0 %v29
  %v31 = vpop.xlane.xlu0 %30
  %v32 = vlog2.pop %v28
  %v33 = vmul.f32 %v32, 0.6931472
  %v34 = vlog2.pop %v31
  %v35 = vmul.f32 %v34, 0.6931472
  %v36 = vsub.f32 %v20, %v33
  %v37 = vsub.f32 %v21, %v35
  %v38 = vmax.f32 %v36, -100.0
  %v39 = vmax.f32 %v37, -100.0
  %v40 = vsub.f32 %v28, %v23
  %v41 = vsub.f32 %v31, %v25
  %v42 = vmax.f32 %v40, 0.0
  %v43 = vmax.f32 %v41, 0.0
  %v44 = vlog2.pop %v42
  %v45 = vmul.f32 %v44, 0.6931472
  %v46 = vlog2.pop %v43
  %v47 = vmul.f32 %v46, 0.6931472
  %v48 = vsub.f32 %v45, %v33
  %v49 = vsub.f32 %v47, %v35
  %v50 = vmax.f32 %v48, -100.0
  %v51 = vmax.f32 %v49, -100.0
  %v52 = vlaneseq
  %v53 = vand.u32 %v52, 127
  %v54 = vld [vmem:[%s1] sm:$0xff]
  %v55 = vld [vmem:[%s1 + $0x8] sm:$0xff]
  %56 = vset.pattern.permute.xlu0 0
  %57 = vperm.xlu0 %56, %v54
  %v58 = vpop.permute.xlu0 %57
  %59 = vset.pattern.permute.xlu0 0
  %60 = vperm.xlu0 %59, %v55
  %v61 = vpop.permute.xlu0 %60
  %vm62 = vcmp.eq.s32.totalorder %v53, %v58
  %vm63 = vcmp.eq.s32.totalorder %v53, %v61
  %v64 = vsub.f32 %v50, %v38
  %v65 = vsub.f32 %v51, %v39
  %v66 = vsel %vm62, %v64, 0.0
  %v67 = vsel %vm63, %v65, 0.0
  %v68 = vsel %vm13, %v66, 0.0
  %69 = vadd.xlane.f32.xlu0 %v68
  %v70 = vpop.xlane.xlu0 %69
  %v71 = vsel %vm13, %v67, 0.0
  %72 = vadd.xlane.f32.xlu0 %v71
  %v73 = vpop.xlane.xlu0 %72
  %v74 = vsel %vm13, %v50, 0.0
  %75 = vadd.xlane.f32.xlu0 %v74
  %v76 = vpop.xlane.xlu0 %75
  %v77 = vsel %vm13, %v51, 0.0
  %78 = vadd.xlane.f32.xlu0 %v77
  %v79 = vpop.xlane.xlu0 %78
  %v80 = vsub.f32 %v70, %v76
  %v81 = vsub.f32 %v73, %v79
  %s82 = smul.u32 0, 16
  %v83 = vlaneseq
  %v84 = vshrl.u32 %v83, 7
  %v85 = vadd.s32 %v84, 8
  %v86 = vstv %s82
  %v87 = vadd.s32 %v86, %v84
  %v88 = vadd.s32 %v86, %v85
  %vm89 = vcmp.lt.s32.totalorder %v87, 16
  %vm90 = vcmp.lt.s32.totalorder %v88, 16
  %v91 = vsel %vm89, %v80, 0.0
  %v92 = vsel %vm90, %v81, 0.0
  %vm93 = vcmask 7168
  %94 = vst.msk [vmem:[%s2] sm:$0xff] %vm93, %v91
  %95 = vst.msk [vmem:[%s2 + $0x8] sm:$0xff] %vm93, %v92
  // Predicated region
  $region10: #{tpu_custom_call.1} parent=0 // pred_check
    _
  $region11: #{tpu_custom_call.1} parent=0 // pred_check_branch
    %97 = sbr.rel (0) target = $region13
  $region12: #{tpu_custom_call.1} parent=0 // pred_region
    _
  $region13: #{tpu_custom_call.1} parent=0 // pred_fallthru
    _
  // Predicated region
  $region14: #{tpu_custom_call.1} parent=0 // pred_check
    _
  $region15: #{tpu_custom_call.1} parent=0 // pred_check_branch
    %99 = sbr.rel (0) target = $region17
  $region16: #{tpu_custom_call.1} parent=0 // pred_region
    _
  $region17: #{tpu_custom_call.1} parent=0 // pred_fallthru
    _

</llo_original>
